<compile_context>
chip_gen: v5e
topology: v5e:2x2
jax: 0.10.0
libtpu: 0.0.40
codegen_flags: <defaults>
</compile_context>

<pallas_src>
import functools

import jax
import jax.numpy as jnp
import numpy as np
from jax.experimental import pallas as pl
from jax.experimental.pallas import tpu as pltpu


# -----------------------------------------------------------------------------
# Excitation path: pooled stats -> fc1 -> PReLU -> fc2 -> sigmoid.
# -----------------------------------------------------------------------------
def _excite(s, w1t_ref, w2t_ref, a_ref):
    """s: (NB, C) f32 pooled stats.  Returns the (NB, C) f32 sigmoid gate."""
    w1t = w1t_ref[...].astype(jnp.float32)          # (C, Cmid)
    w2t = w2t_ref[...].astype(jnp.float32)          # (Cmid, C)
    a = a_ref[0, 0]                                 # PReLU slope (scalar, SMEM)
    c, _ = w1t.shape

    if c >= 128:
        # Production channel counts: use the (otherwise idle) MXU.  These
        # matmuls are stats-sized (block_bytes / L), far off the HBM-streaming
        # roofline, so the extra HIGHEST passes for f32 accuracy are free.
        hi = jax.lax.Precision.HIGHEST
        h = jnp.dot(s, w1t, precision=hi, preferred_element_type=jnp.float32)
        h = jnp.where(h >= 0, h, a * h)
        g = jnp.dot(h, w2t, precision=hi, preferred_element_type=jnp.float32)
    else:
        # Tiny C (toy shapes): exact f32 on the VPU; the (NB, C, Cmid)
        # intermediate is negligible at these sizes.
        h = jnp.sum(s[:, :, None] * w1t[None, :, :], axis=1)     # (NB, Cmid)
        h = jnp.where(h >= 0, h, a * h)
        g = jnp.sum(h[:, :, None] * w2t[None, :, :], axis=1)     # (NB, C)
    return jax.nn.sigmoid(g)                                     # EUP slot


# -----------------------------------------------------------------------------
# Kernel A: natural NCL blocking, used when L is lane-dense (L >= 128).
# -----------------------------------------------------------------------------
def _se_kernel_ncl(x_ref, w1t_ref, w2t_ref, a_ref, out_ref):
    """x_ref/out_ref: (NB, C, L); w1t: (C, Cmid); w2t: (Cmid, C); a: (1,1) SMEM."""
    xf = x_ref[...].astype(jnp.float32)                 # (NB, C, L)
    s = jnp.mean(xf, axis=2)                            # (NB, C) lane-reduce (XLU)
    gate = _excite(s, w1t_ref, w2t_ref, a_ref)          # (NB, C)
    # gate[:, :, None] is a stats-sized (block/L) relayout; the streamed block
    # itself is never relaid out.
    out_ref[...] = (xf * gate[:, :, None]).astype(out_ref.dtype)


# -----------------------------------------------------------------------------
# Kernel B: flat (NB, C*L) blocking for small L.  Loads/stores are lane-dense;
# the per-channel pool and the gate broadcast are matmuls against tiny 0/1
# selector matrices on the idle MXU (no in-kernel reshape of the block).
# -----------------------------------------------------------------------------
def _se_kernel_flat(x_ref, w1t_ref, w2t_ref, a_ref, out_ref, *, c, l):
    xf = x_ref[...].astype(jnp.float32)                 # (NB, C*L), dense lanes
    hi = jax.lax.Precision.HIGHEST                      # exact f32 via MXU passes

    # pool_sel[j, c'] = 1  iff  j // L == c'   (iota + compares; C*L*C is
    # guarded to stay tiny in the wrapper).
    row = jax.lax.broadcasted_iota(jnp.int32, (c * l, c), 0)
    col = jax.lax.broadcasted_iota(jnp.int32, (c * l, c), 1)
    pool_sel = ((row >= col * l) & (row < (col + 1) * l)).astype(jnp.float32)

    s = jnp.dot(xf, pool_sel, precision=hi,
                preferred_element_type=jnp.float32) * (1.0 / l)   # (NB, C)
    gate = _excite(s, w1t_ref, w2t_ref, a_ref)                    # (NB, C)

    # expand_sel[c', j] = 1  iff  j // L == c'  -> per-channel gate broadcast.
    r2 = jax.lax.broadcasted_iota(jnp.int32, (c, c * l), 0)
    c2 = jax.lax.broadcasted_iota(jnp.int32, (c, c * l), 1)
    expand_sel = ((c2 >= r2 * l) & (c2 < (r2 + 1) * l)).astype(jnp.float32)

    gate_flat = jnp.dot(gate, expand_sel, precision=hi,
                        preferred_element_type=jnp.float32)       # (NB, C*L)
    out_ref[...] = (xf * gate_flat).astype(out_ref.dtype)


# -----------------------------------------------------------------------------
# Generation-aware block sizing (memory-bound kernel -> big, dense blocks).
# -----------------------------------------------------------------------------
def _vmem_capacity_bytes():
    try:
        info = pltpu.get_tpu_info()
        return int(getattr(info, "vmem_capacity_bytes", 64 << 20))
    except Exception:                                    # pragma: no cover
        return 64 << 20                                  # conservative (v7x)


def _choose_rows_per_block(n_rows, bytes_per_row, row_granule):
    """Rows of the (rows, ...) view processed per grid step.

    Targets ~1-8 MiB activation blocks (small tiles sit far below the HBM
    roofline), capped by VMEM capacity (v7x: 64 MiB vs v5e/v6e: 128 MiB) with
    headroom for double-buffered in+out, and keeps >=2 grid steps when N
    allows so both v7x TensorCores get work.
    """
    vmem = _vmem_capacity_bytes()
    target = min(8 << 20, max(1 << 20, vmem // 16))
    nb = max(1, min(n_rows, target // max(bytes_per_row, 1)))
    if nb >= n_rows and n_rows >= 2 * row_granule:
        nb = n_rows // 2                                 # keep 2 steps (megacore)
    if row_granule > 1 and nb < n_rows:
        nb = (nb // row_granule) * row_granule           # sublane-dense / legal block
        if nb < row_granule:
            nb = min(row_granule, n_rows)
        if nb != n_rows and nb % row_granule:
            nb = n_rows
    return int(min(max(nb, 1), n_rows))


# -----------------------------------------------------------------------------
# Wrapper: no wrapper-side data movement (the flat view is a free reshape of
# the contiguous NCL buffer).
# -----------------------------------------------------------------------------
@jax.jit
def se_forward(x, w1, w2, a):
    """SEModule forward.

    x:  (N, C, L) activations (PyTorch NCL layout)
    w1: (Cmid, C) = fc1.weight[:, :, 0]
    w2: (C, Cmid) = fc2.weight[:, :, 0]
    a:  scalar PReLU slope
    """
    n, c, l = x.shape
    cmid = w1.shape[0]
    itemsize = jnp.dtype(x.dtype).itemsize

    w1t = jnp.transpose(w1)                              # (C, Cmid)
    w2t = jnp.transpose(w2)                              # (Cmid, C)
    a_smem = jnp.reshape(jnp.asarray(a, jnp.float32), (1, 1))

    vmem = _vmem_capacity_bytes()
    cparams = pltpu.CompilerParams(
        dimension_semantics=("parallel",),
        vmem_limit_bytes=min(int(vmem * 3 // 4), 96 << 20),
    )
    smem = pltpu.MemorySpace.SMEM
    w_specs = [
        pl.BlockSpec((c, cmid), lambda i: (0, 0)),
        pl.BlockSpec((cmid, c), lambda i: (0, 0)),
        pl.BlockSpec((1, 1), lambda i: (0, 0), memory_space=smem),
    ]

    # Lane-dense flat path for small L (otherwise stores are ~L/128 masked);
    # guarded so the 0/1 selector matrices stay tiny.
    use_flat = (l < 128) and ((c * l) % 128 == 0) and (c * l * c * 4 <= (2 << 20))

    if use_flat:
        xf = x.reshape(n, c * l)                         # bit-identical view
        nb = _choose_rows_per_block(n, c * l * itemsize, row_granule=8)
        out = pl.pallas_call(
            functools.partial(_se_kernel_flat, c=c, l=l),
            out_shape=jax.ShapeDtypeStruct((n, c * l), x.dtype),
            grid=(pl.cdiv(n, nb),),
            in_specs=[pl.BlockSpec((nb, c * l), lambda i: (i, 0))] + w_specs,
            out_specs=pl.BlockSpec((nb, c * l), lambda i: (i, 0)),
            compiler_params=cparams,
        )(xf, w1t, w2t, a_smem)
        return out.reshape(n, c, l)

    # Natural NCL blocking (production L >= 128 is already lane-dense).
    # TODO(synk): L < 128 with C*L not 128-aligned still takes this path and
    # pays masked stores; pad L or extend the selector path if that case matters.
    nb = _choose_rows_per_block(n, c * l * itemsize, row_granule=1)
    return pl.pallas_call(
        _se_kernel_ncl,
        out_shape=jax.ShapeDtypeStruct((n, c, l), x.dtype),
        grid=(pl.cdiv(n, nb),),
        in_specs=[pl.BlockSpec((nb, c, l), lambda i: (i, 0, 0))] + w_specs,
        out_specs=pl.BlockSpec((nb, c, l), lambda i: (i, 0, 0)),
        compiler_params=cparams,
    )(x, w1t, w2t, a_smem)


if __name__ == "__main__":
    def reference(x, w1, w2, a):
        hi = jax.lax.Precision.HIGHEST
        s = jnp.mean(x.astype(jnp.float32), axis=2)              # (N, C)
        h = jnp.einsum('mc,nc->nm', w1, s, precision=hi)         # fc1
        h = jnp.where(h >= 0, h, a * h)                          # PReLU
        g = jnp.einsum('cm,nm->nc', w2, h, precision=hi)         # fc2
        return x * jax.nn.sigmoid(g)[:, :, None]

    key = jax.random.PRNGKey(0)
    kx, k1, k2, kx2 = jax.random.split(key, 4)

    # Module hyper-parameters (toy sizes): channels=16, reduction=4.
    C, reduction = 16, 4
    Cmid = C // reduction
    w1 = 0.2 * jax.random.normal(k1, (Cmid, C), dtype=jnp.float32)   # fc1.weight[:, :, 0]
    w2 = 0.2 * jax.random.normal(k2, (C, Cmid), dtype=jnp.float32)   # fc2.weight[:, :, 0]
    a = jnp.float32(0.25)                                            # PReLU default init

    # Case 1: small L (L=16) -> lane-dense flat path.
    x_small = jax.random.normal(kx, (2, C, 16), dtype=jnp.float32)
    out_small = jax.block_until_ready(se_forward(x_small, w1, w2, a))
    assert out_small.shape == x_small.shape
    np.testing.assert_allclose(np.asarray(out_small),
                               np.asarray(reference(x_small, w1, w2, a)),
                               rtol=1e-5, atol=1e-5)

    # Case 2: lane-dense L (L=128) -> natural NCL path.
    x_big = jax.random.normal(kx2, (2, C, 128), dtype=jnp.float32)
    out_big = jax.block_until_ready(se_forward(x_big, w1, w2, a))
    assert out_big.shape == x_big.shape
    np.testing.assert_allclose(np.asarray(out_big),
                               np.asarray(reference(x_big, w1, w2, a)),
                               rtol=1e-5, atol=1e-5)

    print("KERNEL_OK")
</pallas_src>

<mosaic_0001>
module attributes {stable_mosaic.version = 11 : i64} {
  func.func @_se_kernel_flat(%arg0: i32, %arg1: memref<2x256xf32, #tpu.memory_space<vmem>>, %arg2: memref<16x4xf32, #tpu.memory_space<vmem>>, %arg3: memref<4x16xf32, #tpu.memory_space<vmem>>, %arg4: memref<1x1xf32, #tpu.memory_space<smem>>, %arg5: memref<2x256xf32, #tpu.memory_space<vmem>>) attributes {dimension_semantics = [#tpu.dimension_semantics<parallel>], iteration_bounds = array<i64: 1>, scalar_prefetch = 0 : i64, scratch_operands = 0 : i64, tpu.core_type = #tpu.core_type<tc>, window_params = [{transform_indices = @transform_0, window_bounds = array<i64: 2, 256>}, {pipeline_mode = #tpu.pipeline_mode<synchronous>, transform_indices = @transform_1, window_bounds = array<i64: 16, 4>}, {pipeline_mode = #tpu.pipeline_mode<synchronous>, transform_indices = @transform_2, window_bounds = array<i64: 4, 16>}, {transform_indices = @transform_3, window_bounds = array<i64: 1, 1>}, {transform_indices = @transform_4, window_bounds = array<i64: 2, 256>}]} {
    %c0 = arith.constant 0 : index
    %c0_0 = arith.constant 0 : index
    %0 = vector.load %arg1[%c0, %c0_0] : memref<2x256xf32, #tpu.memory_space<vmem>>, vector<2x256xf32>
    %1 = tpu.iota {dimensions = array<i32: 0>} : vector<256x16xi32>
    %2 = tpu.iota {dimensions = array<i32: 1>} : vector<256x16xi32>
    %c16_i32 = arith.constant 16 : i32
    %3 = vector.broadcast %c16_i32 : i32 to vector<256x16xi32>
    %4 = arith.muli %2, %3 : vector<256x16xi32>
    %5 = arith.cmpi sge, %1, %4 : vector<256x16xi32>
    %c1_i32 = arith.constant 1 : i32
    %6 = vector.broadcast %c1_i32 : i32 to vector<256x16xi32>
    %7 = arith.addi %2, %6 : vector<256x16xi32>
    %c16_i32_1 = arith.constant 16 : i32
    %8 = vector.broadcast %c16_i32_1 : i32 to vector<256x16xi32>
    %9 = arith.muli %7, %8 : vector<256x16xi32>
    %10 = arith.cmpi slt, %1, %9 : vector<256x16xi32>
    %11 = arith.andi %5, %10 : vector<256x16xi1>
    %12 = arith.extui %11 : vector<256x16xi1> to vector<256x16xi32>
    %13 = arith.sitofp %12 : vector<256x16xi32> to vector<256x16xf32>
    %cst = arith.constant dense<0.000000e+00> : vector<2x16xf32>
    %14 = tpu.matmul %0, %13, %cst {dimension_numbers = #tpu.dot_dimension_numbers<[1], [0], [0], [1], [0, 0, 1, 1], [], []>, precision = #tpu.contract_precision<fp32>} : vector<2x256xf32>, vector<256x16xf32>, vector<2x16xf32> -> vector<2x16xf32>
    %cst_2 = arith.constant 6.250000e-02 : f32
    %15 = vector.broadcast %cst_2 : f32 to vector<2x16xf32>
    %16 = arith.mulf %14, %15 : vector<2x16xf32>
    %c0_3 = arith.constant 0 : index
    %c0_4 = arith.constant 0 : index
    %17 = vector.load %arg2[%c0_3, %c0_4] : memref<16x4xf32, #tpu.memory_space<vmem>>, vector<16x4xf32>
    %c0_5 = arith.constant 0 : index
    %c0_6 = arith.constant 0 : index
    %18 = vector.load %arg3[%c0_5, %c0_6] : memref<4x16xf32, #tpu.memory_space<vmem>>, vector<4x16xf32>
    %c0_7 = arith.constant 0 : index
    %c0_8 = arith.constant 0 : index
    %19 = memref.load %arg4[%c0_7, %c0_8] : memref<1x1xf32, #tpu.memory_space<smem>>
    %20 = vector.shape_cast %16 : vector<2x16xf32> to vector<2x16x1xf32>
    %21 = vector.shape_cast %17 : vector<16x4xf32> to vector<1x16x4xf32>
    %22 = vector.broadcast %20 : vector<2x16x1xf32> to vector<2x16x4xf32>
    %23 = vector.broadcast %21 : vector<1x16x4xf32> to vector<2x16x4xf32>
    %24 = arith.mulf %22, %23 : vector<2x16x4xf32>
    %cst_9 = arith.constant dense<0.000000e+00> : vector<2x4xf32>
    %25 = vector.multi_reduction <add>, %24, %cst_9 [1] : vector<2x16x4xf32> to vector<2x4xf32>
    %cst_10 = arith.constant 0.000000e+00 : f32
    %26 = vector.broadcast %cst_10 : f32 to vector<2x4xf32>
    %27 = arith.cmpf oge, %25, %26 : vector<2x4xf32>
    %28 = vector.broadcast %19 : f32 to vector<2x4xf32>
    %29 = arith.mulf %28, %25 : vector<2x4xf32>
    %30 = arith.select %27, %25, %29 : vector<2x4xi1>, vector<2x4xf32>
    %31 = vector.shape_cast %30 : vector<2x4xf32> to vector<2x4x1xf32>
    %32 = vector.shape_cast %18 : vector<4x16xf32> to vector<1x4x16xf32>
    %33 = vector.broadcast %31 : vector<2x4x1xf32> to vector<2x4x16xf32>
    %34 = vector.broadcast %32 : vector<1x4x16xf32> to vector<2x4x16xf32>
    %35 = arith.mulf %33, %34 : vector<2x4x16xf32>
    %cst_11 = arith.constant dense<0.000000e+00> : vector<2x16xf32>
    %36 = vector.multi_reduction <add>, %35, %cst_11 [1] : vector<2x4x16xf32> to vector<2x16xf32>
    %37 = arith.negf %36 : vector<2x16xf32>
    %38 = math.exp %37 : vector<2x16xf32>
    %cst_12 = arith.constant 1.000000e+00 : f32
    %39 = vector.broadcast %cst_12 : f32 to vector<2x16xf32>
    %40 = arith.addf %39, %38 : vector<2x16xf32>
    %41 = arith.divf %39, %40 : vector<2x16xf32>
    %42 = tpu.iota {dimensions = array<i32: 0>} : vector<16x256xi32>
    %43 = tpu.iota {dimensions = array<i32: 1>} : vector<16x256xi32>
    %c16_i32_13 = arith.constant 16 : i32
    %44 = vector.broadcast %c16_i32_13 : i32 to vector<16x256xi32>
    %45 = arith.muli %42, %44 : vector<16x256xi32>
    %46 = arith.cmpi sge, %43, %45 : vector<16x256xi32>
    %c1_i32_14 = arith.constant 1 : i32
    %47 = vector.broadcast %c1_i32_14 : i32 to vector<16x256xi32>
    %48 = arith.addi %42, %47 : vector<16x256xi32>
    %c16_i32_15 = arith.constant 16 : i32
    %49 = vector.broadcast %c16_i32_15 : i32 to vector<16x256xi32>
    %50 = arith.muli %48, %49 : vector<16x256xi32>
    %51 = arith.cmpi slt, %43, %50 : vector<16x256xi32>
    %52 = arith.andi %46, %51 : vector<16x256xi1>
    %53 = arith.extui %52 : vector<16x256xi1> to vector<16x256xi32>
    %54 = arith.sitofp %53 : vector<16x256xi32> to vector<16x256xf32>
    %cst_16 = arith.constant dense<0.000000e+00> : vector<2x256xf32>
    %55 = tpu.matmul %41, %54, %cst_16 {dimension_numbers = #tpu.dot_dimension_numbers<[1], [0], [0], [1], [0, 0, 1, 1], [], []>, precision = #tpu.contract_precision<fp32>} : vector<2x16xf32>, vector<16x256xf32>, vector<2x256xf32> -> vector<2x256xf32>
    %56 = arith.mulf %0, %55 : vector<2x256xf32>
    %c0_17 = arith.constant 0 : index
    %c0_18 = arith.constant 0 : index
    %57 = vector.load %arg5[%c0_17, %c0_18] : memref<2x256xf32, #tpu.memory_space<vmem>>, vector<2x256xf32>
    tpu.vector_store %arg5[%c0_17, %c0_18], %56 {strides = array<i32>} : memref<2x256xf32, #tpu.memory_space<vmem>>, vector<2x256xf32>,
    return
  }
  func.func @transform_0(%arg0: i32) -> (i32, i32) {
    %c0_i32 = arith.constant 0 : i32
    %c0_i32_0 = arith.constant 0 : i32
    return %arg0, %c0_i32 : i32, i32
  }
  func.func @transform_1(%arg0: i32) -> (i32, i32) {
    %c0_i32 = arith.constant 0 : i32
    %c0_i32_0 = arith.constant 0 : i32
    %c0_i32_1 = arith.constant 0 : i32
    return %c0_i32, %c0_i32_0 : i32, i32
  }
  func.func @transform_2(%arg0: i32) -> (i32, i32) {
    %c0_i32 = arith.constant 0 : i32
    %c0_i32_0 = arith.constant 0 : i32
    %c0_i32_1 = arith.constant 0 : i32
    return %c0_i32, %c0_i32_0 : i32, i32
  }
  func.func @transform_3(%arg0: i32) -> (i32, i32) {
    %c0_i32 = arith.constant 0 : i32
    %c0_i32_0 = arith.constant 0 : i32
    %c0_i32_1 = arith.constant 0 : i32
    return %c0_i32, %c0_i32_0 : i32, i32
  }
  func.func @transform_4(%arg0: i32) -> (i32, i32) {
    %c0_i32 = arith.constant 0 : i32
    %c0_i32_0 = arith.constant 0 : i32
    return %arg0, %c0_i32 : i32, i32
  }
}

</mosaic_0001>

<llo_original>
// kernel: se_forward.1
$region0: #{se_forward.1}
  #allocation0 [shape = 'u32[]', space=smem, size = 0x4, offset = 0x4, fixed_abs, tag = 'smem constant byte address 0x4 - core index']
  #allocation1 [shape = 'u32[72,128]{1,0:T(1,128)}', space=vmem, size = 0x9000, scoped, tag = 'internal scratch']
  #allocation2 [shape = 'f32[1,1]{1,0:T(1,128)S(6)}', space=smem, size = 0x200, scoped, tag = 'scoped memory for se_forward.1']
  %s0 = inlined_call_operand.vmem [shape: f32[2,256], index: 0, kind: input, shape index: {}]
  %s1 = inlined_call_operand.vmem [shape: f32[16,4], index: 1, kind: input, shape index: {}]
  %s2 = inlined_call_operand.vmem [shape: f32[4,16], index: 2, kind: input, shape index: {}]
  %s3 = inlined_call_operand.<no memory space> [shape: f32[1,1], index: 3, kind: input, shape index: {}]
  %s4 = inlined_call_operand.vmem [shape: f32[2,256], index: 4, kind: output, shape index: {}]
  %s5 = sld [smem:[#allocation0]]
  $region26: #{se_forward.1} parent=0
    _
  %s7 = ssub.s32 1, %s5
  %s8 = scalar_select 0, %s7, %s5
  %9 = sst [smem:[#allocation2]] %s3
  // Predicated region
  $region2: #{se_forward.1} parent=0 // pred_check
    _
  $region3: #{se_forward.1} parent=0 // pred_check_branch
    %11 = sbr.rel (0) target = $region5
  $region4: #{se_forward.1} parent=0 // pred_region
    _
  $region5: #{se_forward.1} parent=0 // pred_fallthru
    _
  // Predicated region
  $region6: #{se_forward.1} parent=0 // pred_check
    _
  $region7: #{se_forward.1} parent=0 // pred_check_branch
    %13 = sbr.rel (0) target = $region9
  $region8: #{se_forward.1} parent=0 // pred_region
    _
  $region9: #{se_forward.1} parent=0 // pred_fallthru
    _
  // Predicated region
  $region10: #{se_forward.1} parent=0 // pred_check
    _
  $region11: #{se_forward.1} parent=0 // pred_check_branch
    %15 = sbr.rel (0) target = $region13
  $region12: #{se_forward.1} parent=0 // pred_region
    _
  $region13: #{se_forward.1} parent=0 // pred_fallthru
    _
  // Predicated region
  $region14: #{se_forward.1} parent=0 // pred_check
    _
  $region15: #{se_forward.1} parent=0 // pred_check_branch
    %17 = sbr.rel (0) target = $region17
  $region16: #{se_forward.1} parent=0 // pred_region
    _
  $region17: #{se_forward.1} parent=0 // pred_fallthru
    _
  %v18 = vld [vmem:[%s0] sm:$0xf]
  %v19 = vlaneseq
  %v20 = vshrl.u32 %v19, 7
  %v21 = vadd.s32 %v20, 8
  %v22 = vadd.s32 %v20, 16
  %v23 = vadd.s32 %v20, 24
  %v24 = vadd.s32 %v20, 32
  %v25 = vadd.s32 %v20, 40
  %v26 = vadd.s32 %v20, 48
  %v27 = vadd.s32 %v20, 56
  %v28 = vadd.s32 %v20, 64
  %v29 = vadd.s32 %v20, 72
  %v30 = vadd.s32 %v20, 80
  %v31 = vadd.s32 %v20, 88
  %v32 = vadd.s32 %v20, 96
  %v33 = vadd.s32 %v20, 104
  %v34 = vadd.s32 %v20, 112
  %v35 = vadd.s32 %v20, 120
  %v36 = vadd.s32 %v20, 128
  %v37 = vadd.s32 %v20, 136
  %v38 = vadd.s32 %v20, 144
  %v39 = vadd.s32 %v20, 152
  %v40 = vadd.s32 %v20, 160
  %v41 = vadd.s32 %v20, 168
  %v42 = vadd.s32 %v20, 176
  %v43 = vadd.s32 %v20, 184
  %v44 = vadd.s32 %v20, 192
  %v45 = vadd.s32 %v20, 200
  %v46 = vadd.s32 %v20, 208
  %v47 = vadd.s32 %v20, 216
  %v48 = vadd.s32 %v20, 224
  %v49 = vadd.s32 %v20, 232
  %v50 = vadd.s32 %v20, 240
  %v51 = vadd.s32 %v20, 248
  %v52 = vlaneseq
  %v53 = vand.u32 %v52, 127
  %v54 = vmul.u32 %v53, 16
  %vm55 = vcmp.ge.s32.totalorder %v20, %v54
  %vm56 = vcmp.ge.s32.totalorder %v21, %v54
  %vm57 = vcmp.ge.s32.totalorder %v22, %v54
  %vm58 = vcmp.ge.s32.totalorder %v23, %v54
  %vm59 = vcmp.ge.s32.totalorder %v24, %v54
  %vm60 = vcmp.ge.s32.totalorder %v25, %v54
  %vm61 = vcmp.ge.s32.totalorder %v26, %v54
  %vm62 = vcmp.ge.s32.totalorder %v27, %v54
  %vm63 = vcmp.ge.s32.totalorder %v28, %v54
  %vm64 = vcmp.ge.s32.totalorder %v29, %v54
  %vm65 = vcmp.ge.s32.totalorder %v30, %v54
  %vm66 = vcmp.ge.s32.totalorder %v31, %v54
  %vm67 = vcmp.ge.s32.totalorder %v32, %v54
  %vm68 = vcmp.ge.s32.totalorder %v33, %v54
  %vm69 = vcmp.ge.s32.totalorder %v34, %v54
  %vm70 = vcmp.ge.s32.totalorder %v35, %v54
  %vm71 = vcmp.ge.s32.totalorder %v36, %v54
  %vm72 = vcmp.ge.s32.totalorder %v37, %v54
  %vm73 = vcmp.ge.s32.totalorder %v38, %v54
  %vm74 = vcmp.ge.s32.totalorder %v39, %v54
  %vm75 = vcmp.ge.s32.totalorder %v40, %v54
  %vm76 = vcmp.ge.s32.totalorder %v41, %v54
  %vm77 = vcmp.ge.s32.totalorder %v42, %v54
  %vm78 = vcmp.ge.s32.totalorder %v43, %v54
  %vm79 = vcmp.ge.s32.totalorder %v44, %v54
  %vm80 = vcmp.ge.s32.totalorder %v45, %v54
  %vm81 = vcmp.ge.s32.totalorder %v46, %v54
  %vm82 = vcmp.ge.s32.totalorder %v47, %v54
  %vm83 = vcmp.ge.s32.totalorder %v48, %v54
  %vm84 = vcmp.ge.s32.totalorder %v49, %v54
  %vm85 = vcmp.ge.s32.totalorder %v50, %v54
  %vm86 = vcmp.ge.s32.totalorder %v51, %v54
  %v87 = vadd.s32 %v53, 1
  %v88 = vmul.u32 %v87, 16
  %vm89 = vcmp.lt.s32.totalorder %v20, %v88
  %vm90 = vcmp.lt.s32.totalorder %v21, %v88
  %vm91 = vcmp.lt.s32.totalorder %v22, %v88
  %vm92 = vcmp.lt.s32.totalorder %v23, %v88
  %vm93 = vcmp.lt.s32.totalorder %v24, %v88
  %vm94 = vcmp.lt.s32.totalorder %v25, %v88
  %vm95 = vcmp.lt.s32.totalorder %v26, %v88
  %vm96 = vcmp.lt.s32.totalorder %v27, %v88
  %vm97 = vcmp.lt.s32.totalorder %v28, %v88
  %vm98 = vcmp.lt.s32.totalorder %v29, %v88
  %vm99 = vcmp.lt.s32.totalorder %v30, %v88
  %vm100 = vcmp.lt.s32.totalorder %v31, %v88
  %vm101 = vcmp.lt.s32.totalorder %v32, %v88
  %vm102 = vcmp.lt.s32.totalorder %v33, %v88
  %vm103 = vcmp.lt.s32.totalorder %v34, %v88
  %vm104 = vcmp.lt.s32.totalorder %v35, %v88
  %vm105 = vcmp.lt.s32.totalorder %v36, %v88
  %vm106 = vcmp.lt.s32.totalorder %v37, %v88
  %vm107 = vcmp.lt.s32.totalorder %v38, %v88
  %vm108 = vcmp.lt.s32.totalorder %v39, %v88
  %vm109 = vcmp.lt.s32.totalorder %v40, %v88
  %vm110 = vcmp.lt.s32.totalorder %v41, %v88
  %vm111 = vcmp.lt.s32.totalorder %v42, %v88
  %vm112 = vcmp.lt.s32.totalorder %v43, %v88
  %vm113 = vcmp.lt.s32.totalorder %v44, %v88
  %vm114 = vcmp.lt.s32.totalorder %v45, %v88
  %vm115 = vcmp.lt.s32.totalorder %v46, %v88
  %vm116 = vcmp.lt.s32.totalorder %v47, %v88
  %vm117 = vcmp.lt.s32.totalorder %v48, %v88
  %vm118 = vcmp.lt.s32.totalorder %v49, %v88
  %vm119 = vcmp.lt.s32.totalorder %v50, %v88
  %vm120 = vcmp.lt.s32.totalorder %v51, %v88
  %vm121 = vmand %vm55, %vm89
  %vm122 = vmand %vm56, %vm90
  %vm123 = vmand %vm57, %vm91
  %vm124 = vmand %vm58, %vm92
  %vm125 = vmand %vm59, %vm93
  %vm126 = vmand %vm60, %vm94
  %vm127 = vmand %vm61, %vm95
  %vm128 = vmand %vm62, %vm96
  %vm129 = vmand %vm63, %vm97
  %vm130 = vmand %vm64, %vm98
  %vm131 = vmand %vm65, %vm99
  %vm132 = vmand %vm66, %vm100
  %vm133 = vmand %vm67, %vm101
  %vm134 = vmand %vm68, %vm102
  %vm135 = vmand %vm69, %vm103
  %vm136 = vmand %vm70, %vm104
  %vm137 = vmand %vm71, %vm105
  %vm138 = vmand %vm72, %vm106
  %vm139 = vmand %vm73, %vm107
  %vm140 = vmand %vm74, %vm108
  %vm141 = vmand %vm75, %vm109
  %vm142 = vmand %vm76, %vm110
  %vm143 = vmand %vm77, %vm111
  %vm144 = vmand %vm78, %vm112
  %vm145 = vmand %vm79, %vm113
  %vm146 = vmand %vm80, %vm114
  %vm147 = vmand %vm81, %vm115
  %vm148 = vmand %vm82, %vm116
  %vm149 = vmand %vm83, %vm117
  %vm150 = vmand %vm84, %vm118
  %vm151 = vmand %vm85, %vm119
  %vm152 = vmand %vm86, %vm120
  %v153 = vsel %vm121, 1, 0
  %v154 = vsel %vm122, 1, 0
  %v155 = vsel %vm123, 1, 0
  %v156 = vsel %vm124, 1, 0
  %v157 = vsel %vm125, 1, 0
  %v158 = vsel %vm126, 1, 0
  %v159 = vsel %vm127, 1, 0
  %v160 = vsel %vm128, 1, 0
  %v161 = vsel %vm129, 1, 0
  %v162 = vsel %vm130, 1, 0
  %v163 = vsel %vm131, 1, 0
  %v164 = vsel %vm132, 1, 0
  %v165 = vsel %vm133, 1, 0
  %v166 = vsel %vm134, 1, 0
  %v167 = vsel %vm135, 1, 0
  %v168 = vsel %vm136, 1, 0
  %v169 = vsel %vm137, 1, 0
  %v170 = vsel %vm138, 1, 0
  %v171 = vsel %vm139, 1, 0
  %v172 = vsel %vm140, 1, 0
  %v173 = vsel %vm141, 1, 0
  %v174 = vsel %vm142, 1, 0
  %v175 = vsel %vm143, 1, 0
  %v176 = vsel %vm144, 1, 0
  %v177 = vsel %vm145, 1, 0
  %v178 = vsel %vm146, 1, 0
  %v179 = vsel %vm147, 1, 0
  %v180 = vsel %vm148, 1, 0
  %v181 = vsel %vm149, 1, 0
  %v182 = vsel %vm150, 1, 0
  %v183 = vsel %vm151, 1, 0
  %v184 = vsel %vm152, 1, 0
  %v185 = vcvt.s32.f32 %v153
  %v186 = vcvt.s32.f32 %v154
  %v187 = vcvt.s32.f32 %v155
  %v188 = vcvt.s32.f32 %v156
  %v189 = vcvt.s32.f32 %v157
  %v190 = vcvt.s32.f32 %v158
  %v191 = vcvt.s32.f32 %v159
  %v192 = vcvt.s32.f32 %v160
  %v193 = vcvt.s32.f32 %v161
  %v194 = vcvt.s32.f32 %v162
  %v195 = vcvt.s32.f32 %v163
  %v196 = vcvt.s32.f32 %v164
  %v197 = vcvt.s32.f32 %v165
  %v198 = vcvt.s32.f32 %v166
  %v199 = vcvt.s32.f32 %v167
  %v200 = vcvt.s32.f32 %v168
  %v201 = vcvt.s32.f32 %v169
  %v202 = vcvt.s32.f32 %v170
  %v203 = vcvt.s32.f32 %v171
  %v204 = vcvt.s32.f32 %v172
  %v205 = vcvt.s32.f32 %v173
  %v206 = vcvt.s32.f32 %v174
  %v207 = vcvt.s32.f32 %v175
  %v208 = vcvt.s32.f32 %v176
  %v209 = vcvt.s32.f32 %v177
  %v210 = vcvt.s32.f32 %v178
  %v211 = vcvt.s32.f32 %v179
  %v212 = vcvt.s32.f32 %v180
  %v213 = vcvt.s32.f32 %v181
  %v214 = vcvt.s32.f32 %v182
  %v215 = vcvt.s32.f32 %v183
  %v216 = vcvt.s32.f32 %v184
  %218 = vst [vmem:[#allocation1] ss:$4 sm:$0xff] %v18
  %v219 = vld.sshfl [vmem:[#allocation1] sm:$0xff pattern:$0x73625140]
  %v220 = vld.sshfl [vmem:[#allocation1 + $0x8] sm:$0xff pattern:$0x73625140]
  %v223 = vand.u32 %v200, 4294901760
  %224 = vmatpush.msra.mxu0 %v223
  %v225 = vand.u32 %v199, 4294901760
  %226 = vmatpush.msra.mxu0 %v225
  %v227 = vand.u32 %v198, 4294901760
  %228 = vmatpush.msra.mxu0 %v227
  %v229 = vand.u32 %v197, 4294901760
  %230 = vmatpush.msra.mxu0 %v229
  %v231 = vand.u32 %v196, 4294901760
  %232 = vmatpush.msra.mxu0 %v231
  %v233 = vand.u32 %v195, 4294901760
  %234 = vmatpush.msra.mxu0 %v233
  %v235 = vand.u32 %v194, 4294901760
  %236 = vmatpush.msra.mxu0 %v235
  %v237 = vand.u32 %v193, 4294901760
  %238 = vmatpush.msra.mxu0 %v237
  %v239 = vand.u32 %v192, 4294901760
  %240 = vmatpush.msra.mxu0 %v239
  %v241 = vand.u32 %v191, 4294901760
  %242 = vmatpush.msra.mxu0 %v241
  %v243 = vand.u32 %v190, 4294901760
  %244 = vmatpush.msra.mxu0 %v243
  %v245 = vand.u32 %v189, 4294901760
  %246 = vmatpush.msra.mxu0 %v245
  %v247 = vand.u32 %v188, 4294901760
  %248 = vmatpush.msra.mxu0 %v247
  %v249 = vand.u32 %v187, 4294901760
  %250 = vmatpush.msra.mxu0 %v249
  %v251 = vand.u32 %v186, 4294901760
  %252 = vmatpush.msra.mxu0 %v251
  %v253 = vand.u32 %v185, 4294901760
  %254 = vmatpush.msra.mxu0 %v253
  %v255 = vand.u32 %v219, 4294901760
  %v256 = vsub.f32 %v219, %v255
  %v257 = vand.u32 %v256, 4294901760
  %v258 = vsub.f32 %v256, %v257
  %v259 = vand.u32 %v258, 4294901760
  %260 = vmatmul.f32.gmra.mxu0 %v259
  %v261 = vpop.f32.mrf.mxu0
  %v262 = vadd.f32 0.0, %v261
  %263 = vdwg.mxu0
  %v264 = vand.u32 %v200, 4294901760
  %v265 = vsub.f32 %v200, %v264
  %v266 = vand.u32 %v265, 4294901760
  %v267 = vsub.f32 %v265, %v266
  %v268 = vand.u32 %v267, 4294901760
  %269 = vmatpush.msra.mxu0 %v268
  %v270 = vand.u32 %v199, 4294901760
  %v271 = vsub.f32 %v199, %v270
  %v272 = vand.u32 %v271, 4294901760
  %v273 = vsub.f32 %v271, %v272
  %v274 = vand.u32 %v273, 4294901760
  %275 = vmatpush.msra.mxu0 %v274
  %v276 = vand.u32 %v198, 4294901760
  %v277 = vsub.f32 %v198, %v276
  %v278 = vand.u32 %v277, 4294901760
  %v279 = vsub.f32 %v277, %v278
  %v280 = vand.u32 %v279, 4294901760
  %281 = vmatpush.msra.mxu0 %v280
  %v282 = vand.u32 %v197, 4294901760
  %v283 = vsub.f32 %v197, %v282
  %v284 = vand.u32 %v283, 4294901760
  %v285 = vsub.f32 %v283, %v284
  %v286 = vand.u32 %v285, 4294901760
  %287 = vmatpush.msra.mxu0 %v286
  %v288 = vand.u32 %v196, 4294901760
  %v289 = vsub.f32 %v196, %v288
  %v290 = vand.u32 %v289, 4294901760
  %v291 = vsub.f32 %v289, %v290
  %v292 = vand.u32 %v291, 4294901760
  %293 = vmatpush.msra.mxu0 %v292
  %v294 = vand.u32 %v195, 4294901760
  %v295 = vsub.f32 %v195, %v294
  %v296 = vand.u32 %v295, 4294901760
  %v297 = vsub.f32 %v295, %v296
  %v298 = vand.u32 %v297, 4294901760
  %299 = vmatpush.msra.mxu0 %v298
  %v300 = vand.u32 %v194, 4294901760
  %v301 = vsub.f32 %v194, %v300
  %v302 = vand.u32 %v301, 4294901760
  %v303 = vsub.f32 %v301, %v302
  %v304 = vand.u32 %v303, 4294901760
  %305 = vmatpush.msra.mxu0 %v304
  %v306 = vand.u32 %v193, 4294901760
  %v307 = vsub.f32 %v193, %v306
  %v308 = vand.u32 %v307, 4294901760
  %v309 = vsub.f32 %v307, %v308
  %v310 = vand.u32 %v309, 4294901760
  %311 = vmatpush.msra.mxu0 %v310
  %v312 = vand.u32 %v192, 4294901760
  %v313 = vsub.f32 %v192, %v312
  %v314 = vand.u32 %v313, 4294901760
  %v315 = vsub.f32 %v313, %v314
  %v316 = vand.u32 %v315, 4294901760
  %317 = vmatpush.msra.mxu0 %v316
  %v318 = vand.u32 %v191, 4294901760
  %v319 = vsub.f32 %v191, %v318
  %v320 = vand.u32 %v319, 4294901760
  %v321 = vsub.f32 %v319, %v320
  %v322 = vand.u32 %v321, 4294901760
  %323 = vmatpush.msra.mxu0 %v322
  %v324 = vand.u32 %v190, 4294901760
  %v325 = vsub.f32 %v190, %v324
  %v326 = vand.u32 %v325, 4294901760
  %v327 = vsub.f32 %v325, %v326
  %v328 = vand.u32 %v327, 4294901760
  %329 = vmatpush.msra.mxu0 %v328
  %v330 = vand.u32 %v189, 4294901760
  %v331 = vsub.f32 %v189, %v330
  %v332 = vand.u32 %v331, 4294901760
  %v333 = vsub.f32 %v331, %v332
  %v334 = vand.u32 %v333, 4294901760
  %335 = vmatpush.msra.mxu0 %v334
  %v336 = vand.u32 %v188, 4294901760
  %v337 = vsub.f32 %v188, %v336
  %v338 = vand.u32 %v337, 4294901760
  %v339 = vsub.f32 %v337, %v338
  %v340 = vand.u32 %v339, 4294901760
  %341 = vmatpush.msra.mxu0 %v340
  %v342 = vand.u32 %v187, 4294901760
  %v343 = vsub.f32 %v187, %v342
  %v344 = vand.u32 %v343, 4294901760
  %v345 = vsub.f32 %v343, %v344
  %v346 = vand.u32 %v345, 4294901760
  %347 = vmatpush.msra.mxu0 %v346
  %v348 = vand.u32 %v186, 4294901760
  %v349 = vsub.f32 %v186, %v348
  %v350 = vand.u32 %v349, 4294901760
  %v351 = vsub.f32 %v349, %v350
  %v352 = vand.u32 %v351, 4294901760
  %353 = vmatpush.msra.mxu0 %v352
  %v354 = vand.u32 %v185, 4294901760
  %v355 = vsub.f32 %v185, %v354
  %v356 = vand.u32 %v355, 4294901760
  %v357 = vsub.f32 %v355, %v356
  %v358 = vand.u32 %v357, 4294901760
  %359 = vmatpush.msra.mxu0 %v358
  %v360 = vand.u32 %v219, 4294901760
  %361 = vmatmul.f32.gmra.mxu0 %v360
  %v362 = vpop.f32.mrf.mxu0
  %v363 = vadd.f32 %v262, %v362
  %364 = vdwg.mxu0
  %v365 = vand.u32 %v200, 4294901760
  %v366 = vsub.f32 %v200, %v365
  %367 = vmatpush.msra.mxu0 %v366
  %v368 = vand.u32 %v199, 4294901760
  %v369 = vsub.f32 %v199, %v368
  %370 = vmatpush.msra.mxu0 %v369
  %v371 = vand.u32 %v198, 4294901760
  %v372 = vsub.f32 %v198, %v371
  %373 = vmatpush.msra.mxu0 %v372
  %v374 = vand.u32 %v197, 4294901760
  %v375 = vsub.f32 %v197, %v374
  %376 = vmatpush.msra.mxu0 %v375
  %v377 = vand.u32 %v196, 4294901760
  %v378 = vsub.f32 %v196, %v377
  %379 = vmatpush.msra.mxu0 %v378
  %v380 = vand.u32 %v195, 4294901760
  %v381 = vsub.f32 %v195, %v380
  %382 = vmatpush.msra.mxu0 %v381
  %v383 = vand.u32 %v194, 4294901760
  %v384 = vsub.f32 %v194, %v383
  %385 = vmatpush.msra.mxu0 %v384
  %v386 = vand.u32 %v193, 4294901760
  %v387 = vsub.f32 %v193, %v386
  %388 = vmatpush.msra.mxu0 %v387
  %v389 = vand.u32 %v192, 4294901760
  %v390 = vsub.f32 %v192, %v389
  %391 = vmatpush.msra.mxu0 %v390
  %v392 = vand.u32 %v191, 4294901760
  %v393 = vsub.f32 %v191, %v392
  %394 = vmatpush.msra.mxu0 %v393
  %v395 = vand.u32 %v190, 4294901760
  %v396 = vsub.f32 %v190, %v395
  %397 = vmatpush.msra.mxu0 %v396
  %v398 = vand.u32 %v189, 4294901760
  %v399 = vsub.f32 %v189, %v398
  %400 = vmatpush.msra.mxu0 %v399
  %v401 = vand.u32 %v188, 4294901760
  %v402 = vsub.f32 %v188, %v401
  %403 = vmatpush.msra.mxu0 %v402
  %v404 = vand.u32 %v187, 4294901760
  %v405 = vsub.f32 %v187, %v404
  %406 = vmatpush.msra.mxu0 %v405
  %v407 = vand.u32 %v186, 4294901760
  %v408 = vsub.f32 %v186, %v407
  %409 = vmatpush.msra.mxu0 %v408
  %v410 = vand.u32 %v185, 4294901760
  %v411 = vsub.f32 %v185, %v410
  %412 = vmatpush.msra.mxu0 %v411
  %v413 = vand.u32 %v219, 4294901760
  %v414 = vsub.f32 %v219, %v413
  %415 = vmatmul.f32.gmra.mxu0 %v414
  %v416 = vpop.f32.mrf.mxu0
  %v417 = vadd.f32 %v363, %v416
  %418 = vdwg.mxu0
  %v419 = vand.u32 %v200, 4294901760
  %420 = vmatpush.msra.mxu0 %v419
  %v421 = vand.u32 %v199, 4294901760
  %422 = vmatpush.msra.mxu0 %v421
  %v423 = vand.u32 %v198, 4294901760
  %424 = vmatpush.msra.mxu0 %v423
  %v425 = vand.u32 %v197, 4294901760
  %426 = vmatpush.msra.mxu0 %v425
  %v427 = vand.u32 %v196, 4294901760
  %428 = vmatpush.msra.mxu0 %v427
  %v429 = vand.u32 %v195, 4294901760
  %430 = vmatpush.msra.mxu0 %v429
  %v431 = vand.u32 %v194, 4294901760
  %432 = vmatpush.msra.mxu0 %v431
  %v433 = vand.u32 %v193, 4294901760
  %434 = vmatpush.msra.mxu0 %v433
  %v435 = vand.u32 %v192, 4294901760
  %436 = vmatpush.msra.mxu0 %v435
  %v437 = vand.u32 %v191, 4294901760
  %438 = vmatpush.msra.mxu0 %v437
  %v439 = vand.u32 %v190, 4294901760
  %440 = vmatpush.msra.mxu0 %v439
  %v441 = vand.u32 %v189, 4294901760
  %442 = vmatpush.msra.mxu0 %v441
  %v443 = vand.u32 %v188, 4294901760
  %444 = vmatpush.msra.mxu0 %v443
  %v445 = vand.u32 %v187, 4294901760
  %446 = vmatpush.msra.mxu0 %v445
  %v447 = vand.u32 %v186, 4294901760
  %448 = vmatpush.msra.mxu0 %v447
  %v449 = vand.u32 %v185, 4294901760
  %450 = vmatpush.msra.mxu0 %v449
  %v451 = vand.u32 %v219, 4294901760
  %v452 = vsub.f32 %v219, %v451
  %v453 = vand.u32 %v452, 4294901760
  %454 = vmatmul.f32.gmra.mxu0 %v453
  %v455 = vpop.f32.mrf.mxu0
  %v456 = vadd.f32 %v417, %v455
  %457 = vdwg.mxu0
  %v458 = vand.u32 %v200, 4294901760
  %v459 = vsub.f32 %v200, %v458
  %v460 = vand.u32 %v459, 4294901760
  %461 = vmatpush.msra.mxu0 %v460
  %v462 = vand.u32 %v199, 4294901760
  %v463 = vsub.f32 %v199, %v462
  %v464 = vand.u32 %v463, 4294901760
  %465 = vmatpush.msra.mxu0 %v464
  %v466 = vand.u32 %v198, 4294901760
  %v467 = vsub.f32 %v198, %v466
  %v468 = vand.u32 %v467, 4294901760
  %469 = vmatpush.msra.mxu0 %v468
  %v470 = vand.u32 %v197, 4294901760
  %v471 = vsub.f32 %v197, %v470
  %v472 = vand.u32 %v471, 4294901760
  %473 = vmatpush.msra.mxu0 %v472
  %v474 = vand.u32 %v196, 4294901760
  %v475 = vsub.f32 %v196, %v474
  %v476 = vand.u32 %v475, 4294901760
  %477 = vmatpush.msra.mxu0 %v476
  %v478 = vand.u32 %v195, 4294901760
  %v479 = vsub.f32 %v195, %v478
  %v480 = vand.u32 %v479, 4294901760
  %481 = vmatpush.msra.mxu0 %v480
  %v482 = vand.u32 %v194, 4294901760
  %v483 = vsub.f32 %v194, %v482
  %v484 = vand.u32 %v483, 4294901760
  %485 = vmatpush.msra.mxu0 %v484
  %v486 = vand.u32 %v193, 4294901760
  %v487 = vsub.f32 %v193, %v486
  %v488 = vand.u32 %v487, 4294901760
  %489 = vmatpush.msra.mxu0 %v488
  %v490 = vand.u32 %v192, 4294901760
  %v491 = vsub.f32 %v192, %v490
  %v492 = vand.u32 %v491, 4294901760
  %493 = vmatpush.msra.mxu0 %v492
  %v494 = vand.u32 %v191, 4294901760
  %v495 = vsub.f32 %v191, %v494
  %v496 = vand.u32 %v495, 4294901760
  %497 = vmatpush.msra.mxu0 %v496
  %v498 = vand.u32 %v190, 4294901760
  %v499 = vsub.f32 %v190, %v498
  %v500 = vand.u32 %v499, 4294901760
  %501 = vmatpush.msra.mxu0 %v500
  %v502 = vand.u32 %v189, 4294901760
  %v503 = vsub.f32 %v189, %v502
  %v504 = vand.u32 %v503, 4294901760
  %505 = vmatpush.msra.mxu0 %v504
  %v506 = vand.u32 %v188, 4294901760
  %v507 = vsub.f32 %v188, %v506
  %v508 = vand.u32 %v507, 4294901760
  %509 = vmatpush.msra.mxu0 %v508
  %v510 = vand.u32 %v187, 4294901760
  %v511 = vsub.f32 %v187, %v510
  %v512 = vand.u32 %v511, 4294901760
  %513 = vmatpush.msra.mxu0 %v512
  %v514 = vand.u32 %v186, 4294901760
  %v515 = vsub.f32 %v186, %v514
  %v516 = vand.u32 %v515, 4294901760
  %517 = vmatpush.msra.mxu0 %v516
  %v518 = vand.u32 %v185, 4294901760
  %v519 = vsub.f32 %v185, %v518
  %v520 = vand.u32 %v519, 4294901760
  %521 = vmatpush.msra.mxu0 %v520
  %v522 = vand.u32 %v219, 4294901760
  %523 = vmatmul.f32.gmra.mxu0 %v522
  %v524 = vpop.f32.mrf.mxu0
  %v525 = vadd.f32 %v456, %v524
  %526 = vdwg.mxu0
  %v527 = vand.u32 %v200, 4294901760
  %528 = vmatpush.msra.mxu0 %v527
  %v529 = vand.u32 %v199, 4294901760
  %530 = vmatpush.msra.mxu0 %v529
  %v531 = vand.u32 %v198, 4294901760
  %532 = vmatpush.msra.mxu0 %v531
  %v533 = vand.u32 %v197, 4294901760
  %534 = vmatpush.msra.mxu0 %v533
  %v535 = vand.u32 %v196, 4294901760
  %536 = vmatpush.msra.mxu0 %v535
  %v537 = vand.u32 %v195, 4294901760
  %538 = vmatpush.msra.mxu0 %v537
  %v539 = vand.u32 %v194, 4294901760
  %540 = vmatpush.msra.mxu0 %v539
  %v541 = vand.u32 %v193, 4294901760
  %542 = vmatpush.msra.mxu0 %v541
  %v543 = vand.u32 %v192, 4294901760
  %544 = vmatpush.msra.mxu0 %v543
  %v545 = vand.u32 %v191, 4294901760
  %546 = vmatpush.msra.mxu0 %v545
  %v547 = vand.u32 %v190, 4294901760
  %548 = vmatpush.msra.mxu0 %v547
  %v549 = vand.u32 %v189, 4294901760
  %550 = vmatpush.msra.mxu0 %v549
  %v551 = vand.u32 %v188, 4294901760
  %552 = vmatpush.msra.mxu0 %v551
  %v553 = vand.u32 %v187, 4294901760
  %554 = vmatpush.msra.mxu0 %v553
  %v555 = vand.u32 %v186, 4294901760
  %556 = vmatpush.msra.mxu0 %v555
  %v557 = vand.u32 %v185, 4294901760
  %558 = vmatpush.msra.mxu0 %v557
  %v559 = vand.u32 %v219, 4294901760
  %560 = vmatmul.f32.gmra.mxu0 %v559
  %v561 = vpop.f32.mrf.mxu0
  %v562 = vadd.f32 %v525, %v561
  %563 = vdwg.mxu0
  %v564 = vand.u32 %v216, 4294901760
  %565 = vmatpush.msra.mxu0 %v564
  %v566 = vand.u32 %v215, 4294901760
  %567 = vmatpush.msra.mxu0 %v566
  %v568 = vand.u32 %v214, 4294901760
  %569 = vmatpush.msra.mxu0 %v568
  %v570 = vand.u32 %v213, 4294901760
  %571 = vmatpush.msra.mxu0 %v570
  %v572 = vand.u32 %v212, 4294901760
  %573 = vmatpush.msra.mxu0 %v572
  %v574 = vand.u32 %v211, 4294901760
  %575 = vmatpush.msra.mxu0 %v574
  %v576 = vand.u32 %v210, 4294901760
  %577 = vmatpush.msra.mxu0 %v576
  %v578 = vand.u32 %v209, 4294901760
  %579 = vmatpush.msra.mxu0 %v578
  %v580 = vand.u32 %v208, 4294901760
  %581 = vmatpush.msra.mxu0 %v580
  %v582 = vand.u32 %v207, 4294901760
  %583 = vmatpush.msra.mxu0 %v582
  %v584 = vand.u32 %v206, 4294901760
  %585 = vmatpush.msra.mxu0 %v584
  %v586 = vand.u32 %v205, 4294901760
  %587 = vmatpush.msra.mxu0 %v586
  %v588 = vand.u32 %v204, 4294901760
  %589 = vmatpush.msra.mxu0 %v588
  %v590 = vand.u32 %v203, 4294901760
  %591 = vmatpush.msra.mxu0 %v590
  %v592 = vand.u32 %v202, 4294901760
  %593 = vmatpush.msra.mxu0 %v592
  %v594 = vand.u32 %v201, 4294901760
  %595 = vmatpush.msra.mxu0 %v594
  %v596 = vand.u32 %v220, 4294901760
  %v597 = vsub.f32 %v220, %v596
  %v598 = vand.u32 %v597, 4294901760
  %v599 = vsub.f32 %v597, %v598
  %v600 = vand.u32 %v599, 4294901760
  %601 = vmatmul.f32.gmra.mxu0 %v600
  %v602 = vpop.f32.mrf.mxu0
  %v603 = vadd.f32 %v562, %v602
  %604 = vdwg.mxu0
  %v605 = vand.u32 %v216, 4294901760
  %v606 = vsub.f32 %v216, %v605
  %v607 = vand.u32 %v606, 4294901760
  %v608 = vsub.f32 %v606, %v607
  %v609 = vand.u32 %v608, 4294901760
  %610 = vmatpush.msra.mxu0 %v609
  %v611 = vand.u32 %v215, 4294901760
  %v612 = vsub.f32 %v215, %v611
  %v613 = vand.u32 %v612, 4294901760
  %v614 = vsub.f32 %v612, %v613
  %v615 = vand.u32 %v614, 4294901760
  %616 = vmatpush.msra.mxu0 %v615
  %v617 = vand.u32 %v214, 4294901760
  %v618 = vsub.f32 %v214, %v617
  %v619 = vand.u32 %v618, 4294901760
  %v620 = vsub.f32 %v618, %v619
  %v621 = vand.u32 %v620, 4294901760
  %622 = vmatpush.msra.mxu0 %v621
  %v623 = vand.u32 %v213, 4294901760
  %v624 = vsub.f32 %v213, %v623
  %v625 = vand.u32 %v624, 4294901760
  %v626 = vsub.f32 %v624, %v625
  %v627 = vand.u32 %v626, 4294901760
  %628 = vmatpush.msra.mxu0 %v627
  %v629 = vand.u32 %v212, 4294901760
  %v630 = vsub.f32 %v212, %v629
  %v631 = vand.u32 %v630, 4294901760
  %v632 = vsub.f32 %v630, %v631
  %v633 = vand.u32 %v632, 4294901760
  %634 = vmatpush.msra.mxu0 %v633
  %v635 = vand.u32 %v211, 4294901760
  %v636 = vsub.f32 %v211, %v635
  %v637 = vand.u32 %v636, 4294901760
  %v638 = vsub.f32 %v636, %v637
  %v639 = vand.u32 %v638, 4294901760
  %640 = vmatpush.msra.mxu0 %v639
  %v641 = vand.u32 %v210, 4294901760
  %v642 = vsub.f32 %v210, %v641
  %v643 = vand.u32 %v642, 4294901760
  %v644 = vsub.f32 %v642, %v643
  %v645 = vand.u32 %v644, 4294901760
  %646 = vmatpush.msra.mxu0 %v645
  %v647 = vand.u32 %v209, 4294901760
  %v648 = vsub.f32 %v209, %v647
  %v649 = vand.u32 %v648, 4294901760
  %v650 = vsub.f32 %v648, %v649
  %v651 = vand.u32 %v650, 4294901760
  %652 = vmatpush.msra.mxu0 %v651
  %v653 = vand.u32 %v208, 4294901760
  %v654 = vsub.f32 %v208, %v653
  %v655 = vand.u32 %v654, 4294901760
  %v656 = vsub.f32 %v654, %v655
  %v657 = vand.u32 %v656, 4294901760
  %658 = vmatpush.msra.mxu0 %v657
  %v659 = vand.u32 %v207, 4294901760
  %v660 = vsub.f32 %v207, %v659
  %v661 = vand.u32 %v660, 4294901760
  %v662 = vsub.f32 %v660, %v661
  %v663 = vand.u32 %v662, 4294901760
  %664 = vmatpush.msra.mxu0 %v663
  %v665 = vand.u32 %v206, 4294901760
  %v666 = vsub.f32 %v206, %v665
  %v667 = vand.u32 %v666, 4294901760
  %v668 = vsub.f32 %v666, %v667
  %v669 = vand.u32 %v668, 4294901760
  %670 = vmatpush.msra.mxu0 %v669
  %v671 = vand.u32 %v205, 4294901760
  %v672 = vsub.f32 %v205, %v671
  %v673 = vand.u32 %v672, 4294901760
  %v674 = vsub.f32 %v672, %v673
  %v675 = vand.u32 %v674, 4294901760
  %676 = vmatpush.msra.mxu0 %v675
  %v677 = vand.u32 %v204, 4294901760
  %v678 = vsub.f32 %v204, %v677
  %v679 = vand.u32 %v678, 4294901760
  %v680 = vsub.f32 %v678, %v679
  %v681 = vand.u32 %v680, 4294901760
  %682 = vmatpush.msra.mxu0 %v681
  %v683 = vand.u32 %v203, 4294901760
  %v684 = vsub.f32 %v203, %v683
  %v685 = vand.u32 %v684, 4294901760
  %v686 = vsub.f32 %v684, %v685
  %v687 = vand.u32 %v686, 4294901760
  %688 = vmatpush.msra.mxu0 %v687
  %v689 = vand.u32 %v202, 4294901760
  %v690 = vsub.f32 %v202, %v689
  %v691 = vand.u32 %v690, 4294901760
  %v692 = vsub.f32 %v690, %v691
  %v693 = vand.u32 %v692, 4294901760
  %694 = vmatpush.msra.mxu0 %v693
  %v695 = vand.u32 %v201, 4294901760
  %v696 = vsub.f32 %v201, %v695
  %v697 = vand.u32 %v696, 4294901760
  %v698 = vsub.f32 %v696, %v697
  %v699 = vand.u32 %v698, 4294901760
  %700 = vmatpush.msra.mxu0 %v699
  %v701 = vand.u32 %v220, 4294901760
  %702 = vmatmul.f32.gmra.mxu0 %v701
  %v703 = vpop.f32.mrf.mxu0
  %v704 = vadd.f32 %v603, %v703
  %705 = vdwg.mxu0
  %v706 = vand.u32 %v216, 4294901760
  %v707 = vsub.f32 %v216, %v706
  %708 = vmatpush.msra.mxu0 %v707
  %v709 = vand.u32 %v215, 4294901760
  %v710 = vsub.f32 %v215, %v709
  %711 = vmatpush.msra.mxu0 %v710
  %v712 = vand.u32 %v214, 4294901760
  %v713 = vsub.f32 %v214, %v712
  %714 = vmatpush.msra.mxu0 %v713
  %v715 = vand.u32 %v213, 4294901760
  %v716 = vsub.f32 %v213, %v715
  %717 = vmatpush.msra.mxu0 %v716
  %v718 = vand.u32 %v212, 4294901760
  %v719 = vsub.f32 %v212, %v718
  %720 = vmatpush.msra.mxu0 %v719
  %v721 = vand.u32 %v211, 4294901760
  %v722 = vsub.f32 %v211, %v721
  %723 = vmatpush.msra.mxu0 %v722
  %v724 = vand.u32 %v210, 4294901760
  %v725 = vsub.f32 %v210, %v724
  %726 = vmatpush.msra.mxu0 %v725
  %v727 = vand.u32 %v209, 4294901760
  %v728 = vsub.f32 %v209, %v727
  %729 = vmatpush.msra.mxu0 %v728
  %v730 = vand.u32 %v208, 4294901760
  %v731 = vsub.f32 %v208, %v730
  %732 = vmatpush.msra.mxu0 %v731
  %v733 = vand.u32 %v207, 4294901760
  %v734 = vsub.f32 %v207, %v733
  %735 = vmatpush.msra.mxu0 %v734
  %v736 = vand.u32 %v206, 4294901760
  %v737 = vsub.f32 %v206, %v736
  %738 = vmatpush.msra.mxu0 %v737
  %v739 = vand.u32 %v205, 4294901760
  %v740 = vsub.f32 %v205, %v739
  %741 = vmatpush.msra.mxu0 %v740
  %v742 = vand.u32 %v204, 4294901760
  %v743 = vsub.f32 %v204, %v742
  %744 = vmatpush.msra.mxu0 %v743
  %v745 = vand.u32 %v203, 4294901760
  %v746 = vsub.f32 %v203, %v745
  %747 = vmatpush.msra.mxu0 %v746
  %v748 = vand.u32 %v202, 4294901760
  %v749 = vsub.f32 %v202, %v748
  %750 = vmatpush.msra.mxu0 %v749
  %v751 = vand.u32 %v201, 4294901760
  %v752 = vsub.f32 %v201, %v751
  %753 = vmatpush.msra.mxu0 %v752
  %v754 = vand.u32 %v220, 4294901760
  %v755 = vsub.f32 %v220, %v754
  %756 = vmatmul.f32.gmra.mxu0 %v755
  %v757 = vpop.f32.mrf.mxu0
  %v758 = vadd.f32 %v704, %v757
  %759 = vdwg.mxu0
  %v760 = vand.u32 %v216, 4294901760
  %761 = vmatpush.msra.mxu0 %v760
  %v762 = vand.u32 %v215, 4294901760
  %763 = vmatpush.msra.mxu0 %v762
  %v764 = vand.u32 %v214, 4294901760
  %765 = vmatpush.msra.mxu0 %v764
  %v766 = vand.u32 %v213, 4294901760
  %767 = vmatpush.msra.mxu0 %v766
  %v768 = vand.u32 %v212, 4294901760
  %769 = vmatpush.msra.mxu0 %v768
  %v770 = vand.u32 %v211, 4294901760
  %771 = vmatpush.msra.mxu0 %v770
  %v772 = vand.u32 %v210, 4294901760
  %773 = vmatpush.msra.mxu0 %v772
  %v774 = vand.u32 %v209, 4294901760
  %775 = vmatpush.msra.mxu0 %v774
  %v776 = vand.u32 %v208, 4294901760
  %777 = vmatpush.msra.mxu0 %v776
  %v778 = vand.u32 %v207, 4294901760
  %779 = vmatpush.msra.mxu0 %v778
  %v780 = vand.u32 %v206, 4294901760
  %781 = vmatpush.msra.mxu0 %v780
  %v782 = vand.u32 %v205, 4294901760
  %783 = vmatpush.msra.mxu0 %v782
  %v784 = vand.u32 %v204, 4294901760
  %785 = vmatpush.msra.mxu0 %v784
  %v786 = vand.u32 %v203, 4294901760
  %787 = vmatpush.msra.mxu0 %v786
  %v788 = vand.u32 %v202, 4294901760
  %789 = vmatpush.msra.mxu0 %v788
  %v790 = vand.u32 %v201, 4294901760
  %791 = vmatpush.msra.mxu0 %v790
  %v792 = vand.u32 %v220, 4294901760
  %v793 = vsub.f32 %v220, %v792
  %v794 = vand.u32 %v793, 4294901760
  %795 = vmatmul.f32.gmra.mxu0 %v794
  %v796 = vpop.f32.mrf.mxu0
  %v797 = vadd.f32 %v758, %v796
  %798 = vdwg.mxu0
  %v799 = vand.u32 %v216, 4294901760
  %v800 = vsub.f32 %v216, %v799
  %v801 = vand.u32 %v800, 4294901760
  %802 = vmatpush.msra.mxu0 %v801
  %v803 = vand.u32 %v215, 4294901760
  %v804 = vsub.f32 %v215, %v803
  %v805 = vand.u32 %v804, 4294901760
  %806 = vmatpush.msra.mxu0 %v805
  %v807 = vand.u32 %v214, 4294901760
  %v808 = vsub.f32 %v214, %v807
  %v809 = vand.u32 %v808, 4294901760
  %810 = vmatpush.msra.mxu0 %v809
  %v811 = vand.u32 %v213, 4294901760
  %v812 = vsub.f32 %v213, %v811
  %v813 = vand.u32 %v812, 4294901760
  %814 = vmatpush.msra.mxu0 %v813
  %v815 = vand.u32 %v212, 4294901760
  %v816 = vsub.f32 %v212, %v815
  %v817 = vand.u32 %v816, 4294901760
  %818 = vmatpush.msra.mxu0 %v817
  %v819 = vand.u32 %v211, 4294901760
  %v820 = vsub.f32 %v211, %v819
  %v821 = vand.u32 %v820, 4294901760
  %822 = vmatpush.msra.mxu0 %v821
  %v823 = vand.u32 %v210, 4294901760
  %v824 = vsub.f32 %v210, %v823
  %v825 = vand.u32 %v824, 4294901760
  %826 = vmatpush.msra.mxu0 %v825
  %v827 = vand.u32 %v209, 4294901760
  %v828 = vsub.f32 %v209, %v827
  %v829 = vand.u32 %v828, 4294901760
  %830 = vmatpush.msra.mxu0 %v829
  %v831 = vand.u32 %v208, 4294901760
  %v832 = vsub.f32 %v208, %v831
  %v833 = vand.u32 %v832, 4294901760
  %834 = vmatpush.msra.mxu0 %v833
  %v835 = vand.u32 %v207, 4294901760
  %v836 = vsub.f32 %v207, %v835
  %v837 = vand.u32 %v836, 4294901760
  %838 = vmatpush.msra.mxu0 %v837
  %v839 = vand.u32 %v206, 4294901760
  %v840 = vsub.f32 %v206, %v839
  %v841 = vand.u32 %v840, 4294901760
  %842 = vmatpush.msra.mxu0 %v841
  %v843 = vand.u32 %v205, 4294901760
  %v844 = vsub.f32 %v205, %v843
  %v845 = vand.u32 %v844, 4294901760
  %846 = vmatpush.msra.mxu0 %v845
  %v847 = vand.u32 %v204, 4294901760
  %v848 = vsub.f32 %v204, %v847
  %v849 = vand.u32 %v848, 4294901760
  %850 = vmatpush.msra.mxu0 %v849
  %v851 = vand.u32 %v203, 4294901760
  %v852 = vsub.f32 %v203, %v851
  %v853 = vand.u32 %v852, 4294901760
  %854 = vmatpush.msra.mxu0 %v853
  %v855 = vand.u32 %v202, 4294901760
  %v856 = vsub.f32 %v202, %v855
  %v857 = vand.u32 %v856, 4294901760
  %858 = vmatpush.msra.mxu0 %v857
  %v859 = vand.u32 %v201, 4294901760
  %v860 = vsub.f32 %v201, %v859
  %v861 = vand.u32 %v860, 4294901760
  %862 = vmatpush.msra.mxu0 %v861
  %v863 = vand.u32 %v220, 4294901760
  %864 = vmatmul.f32.gmra.mxu0 %v863
  %v865 = vpop.f32.mrf.mxu0
  %v866 = vadd.f32 %v797, %v865
  %867 = vdwg.mxu0
  %v868 = vand.u32 %v216, 4294901760
  %869 = vmatpush.msra.mxu0 %v868
  %v870 = vand.u32 %v215, 4294901760
  %871 = vmatpush.msra.mxu0 %v870
  %v872 = vand.u32 %v214, 4294901760
  %873 = vmatpush.msra.mxu0 %v872
  %v874 = vand.u32 %v213, 4294901760
  %875 = vmatpush.msra.mxu0 %v874
  %v876 = vand.u32 %v212, 4294901760
  %877 = vmatpush.msra.mxu0 %v876
  %v878 = vand.u32 %v211, 4294901760
  %879 = vmatpush.msra.mxu0 %v878
  %v880 = vand.u32 %v210, 4294901760
  %881 = vmatpush.msra.mxu0 %v880
  %v882 = vand.u32 %v209, 4294901760
  %883 = vmatpush.msra.mxu0 %v882
  %v884 = vand.u32 %v208, 4294901760
  %885 = vmatpush.msra.mxu0 %v884
  %v886 = vand.u32 %v207, 4294901760
  %887 = vmatpush.msra.mxu0 %v886
  %v888 = vand.u32 %v206, 4294901760
  %889 = vmatpush.msra.mxu0 %v888
  %v890 = vand.u32 %v205, 4294901760
  %891 = vmatpush.msra.mxu0 %v890
  %v892 = vand.u32 %v204, 4294901760
  %893 = vmatpush.msra.mxu0 %v892
  %v894 = vand.u32 %v203, 4294901760
  %895 = vmatpush.msra.mxu0 %v894
  %v896 = vand.u32 %v202, 4294901760
  %897 = vmatpush.msra.mxu0 %v896
  %v898 = vand.u32 %v201, 4294901760
  %899 = vmatpush.msra.mxu0 %v898
  %v900 = vand.u32 %v220, 4294901760
  %901 = vmatmul.f32.gmra.mxu0 %v900
  %v902 = vpop.f32.mrf.mxu0
  %v903 = vadd.f32 %v866, %v902
  %904 = vdwg.mxu0
  %v905 = vmul.f32 %v903, 0.0625
  %v906 = vld [vmem:[%s1] sm:$0xff]
  %v907 = vld [vmem:[%s1 + $0x8] sm:$0xff]
  %v908 = vld [vmem:[%s2] sm:$0xf]
  %s909 = sld [smem:[#allocation2]]
  %v910 = vperm.slane %v905, 0
  %v911 = vlaneseq
  %v912 = vshrl.u32 %v911, 7
  %914 = vset.pattern.permute.xlu0 %v912
  %915 = vperm.xlu0 %914, %v910
  %v916 = vpop.permute.xlu0 %915
  %v917 = vlaneseq
  %v918 = vshrl.u32 %v917, 7
  %v919 = vadd.s32 %v918, 8
  %920 = vset.pattern.permute.xlu0 %v919
  %921 = vperm.xlu0 %920, %v910
  %v922 = vpop.permute.xlu0 %921
  %v923 = vperm.slane %v905, 1
  %v924 = vlaneseq
  %v925 = vshrl.u32 %v924, 7
  %927 = vset.pattern.permute.xlu0 %v925
  %928 = vperm.xlu0 %927, %v923
  %v929 = vpop.permute.xlu0 %928
  %v930 = vlaneseq
  %v931 = vshrl.u32 %v930, 7
  %v932 = vadd.s32 %v931, 8
  %933 = vset.pattern.permute.xlu0 %v932
  %934 = vperm.xlu0 %933, %v923
  %v935 = vpop.permute.xlu0 %934
  %v936 = vmul.f32 %v916, %v906
  %v937 = vmul.f32 %v922, %v907
  %v938 = vmul.f32 %v929, %v906
  %v939 = vmul.f32 %v935, %v907
  %vm940 = vcmask 31744
  %v941 = vsel %vm940, %v936, 0.0
  %v942 = vsel %vm940, %v937, 0.0
  %v943 = vadd.f32 %v941, %v942
  %v944 = vrot.slane %v943, 4
  %v945 = vadd.f32 %v943, %v944
  %v946 = vrot.slane %v945, 2
  %v947 = vadd.f32 %v945, %v946
  %v948 = vrot.slane %v947, 1
  %v949 = vadd.f32 %v947, %v948
  %v950 = vsel %vm940, %v938, 0.0
  %v951 = vsel %vm940, %v939, 0.0
  %v952 = vadd.f32 %v950, %v951
  %v953 = vrot.slane %v952, 4
  %v954 = vadd.f32 %v952, %v953
  %v955 = vrot.slane %v954, 2
  %v956 = vadd.f32 %v954, %v955
  %v957 = vrot.slane %v956, 1
  %v958 = vadd.f32 %v956, %v957
  %vm959 = vcmp.ge.f32.partialorder %v949, 0.0
  %vm960 = vcmp.ge.f32.partialorder %v958, 0.0
  %v961 = vstv %s909
  %v962 = vmul.f32 %v961, %v949
  %v963 = vmul.f32 %v961, %v958
  %v964 = vsel %vm959, %v949, %v962
  %v965 = vsel %vm960, %v958, %v963
  %v966 = vlaneseq
  %v967 = vshrl.u32 %v966, 7
  %969 = vset.pattern.permute.xlu0 %v967
  %970 = vperm.xlu0 %969, %v964
  %v971 = vpop.permute.xlu0 %970
  %v972 = vlaneseq
  %v973 = vshrl.u32 %v972, 7
  %975 = vset.pattern.permute.xlu0 %v973
  %976 = vperm.xlu0 %975, %v965
  %v977 = vpop.permute.xlu0 %976
  %v978 = vmul.f32 %v971, %v908
  %v979 = vmul.f32 %v977, %v908
  %vm980 = vcmask 125952
  %v981 = vsel %vm980, %v978, 0.0
  %v982 = vrot.slane %v981, 4
  %v983 = vadd.f32 %v981, %v982
  %v984 = vrot.slane %v983, 2
  %v985 = vadd.f32 %v983, %v984
  %v986 = vrot.slane %v985, 1
  %v987 = vadd.f32 %v985, %v986
  %v988 = vsel %vm980, %v979, 0.0
  %v989 = vrot.slane %v988, 4
  %v990 = vadd.f32 %v988, %v989
  %v991 = vrot.slane %v990, 2
  %v992 = vadd.f32 %v990, %v991
  %v993 = vrot.slane %v992, 1
  %v994 = vadd.f32 %v992, %v993
  %v995 = vxor.u32 %v987, 2147483648
  %v996 = vxor.u32 %v994, 2147483648
  %v997 = vmul.f32 %v995, 1.442695
  %v998 = vpow.pop %v997
  %v999 = vmul.f32 %v996, 1.442695
  %v1000 = vpow.pop %v999
  %v1001 = vadd.f32 %v998, 1.0
  %v1002 = vadd.f32 %v1000, 1.0
  %v1003 = vrcp.pop %v1001
  %v1004 = vmul.f32 %v1001, %v1003
  %v1005 = vsub.f32 1.0, %v1004
  %v1006 = vmul.f32 %v1003, %v1005
  %v1007 = vadd.f32 %v1003, %v1006
  %vm1008 = vweird.f32 %v1001
  %vm1009 = vweird.f32 %v1003
  %vm1010 = vmor %vm1008, %vm1009
  %v1011 = vsel %vm1010, %v1003, %v1007
  %v1012 = vand.u32 2147483647, %v1001
  %vm1013 = vcmp.eq.f32.partialorder %v1012, 8.507059e+37
  %v1014 = vand.u32 %v1001, 2147483648
  %v1015 = vor.u32 1.1754944e-38, %v1014
  %v1016 = vsel %vm1013, %v1015, %v1011
  %v1017 = vmul.f32 1.0, %v1016
  %v1018 = vrcp.pop %v1002
  %v1019 = vmul.f32 %v1002, %v1018
  %v1020 = vsub.f32 1.0, %v1019
  %v1021 = vmul.f32 %v1018, %v1020
  %v1022 = vadd.f32 %v1018, %v1021
  %vm1023 = vweird.f32 %v1002
  %vm1024 = vweird.f32 %v1018
  %vm1025 = vmor %vm1023, %vm1024
  %v1026 = vsel %vm1025, %v1018, %v1022
  %v1027 = vand.u32 2147483647, %v1002
  %vm1028 = vcmp.eq.f32.partialorder %v1027, 8.507059e+37
  %v1029 = vand.u32 %v1002, 2147483648
  %v1030 = vor.u32 1.1754944e-38, %v1029
  %v1031 = vsel %vm1028, %v1030, %v1026
  %v1032 = vmul.f32 1.0, %v1031
  %v1033 = vadd.s32 %v53, 128
  %v1034 = vmul.u32 %v20, 16
  %v1035 = vmul.u32 %v21, 16
  %vm1036 = vcmp.ge.s32.totalorder %v53, %v1034
  %vm1037 = vcmp.ge.s32.totalorder %v1033, %v1034
  %vm1038 = vcmp.ge.s32.totalorder %v53, %v1035
  %vm1039 = vcmp.ge.s32.totalorder %v1033, %v1035
  %v1040 = vadd.s32 %v20, 1
  %v1041 = vadd.s32 %v21, 1
  %v1042 = vmul.u32 %v1040, 16
  %v1043 = vmul.u32 %v1041, 16
  %vm1044 = vcmp.lt.s32.totalorder %v53, %v1042
  %vm1045 = vcmp.lt.s32.totalorder %v1033, %v1042
  %vm1046 = vcmp.lt.s32.totalorder %v53, %v1043
  %vm1047 = vcmp.lt.s32.totalorder %v1033, %v1043
  %vm1048 = vmand %vm1036, %vm1044
  %vm1049 = vmand %vm1037, %vm1045
  %vm1050 = vmand %vm1038, %vm1046
  %vm1051 = vmand %vm1039, %vm1047
  %v1052 = vsel %vm1048, 1, 0
  %v1053 = vsel %vm1049, 1, 0
  %v1054 = vsel %vm1050, 1, 0
  %v1055 = vsel %vm1051, 1, 0
  %v1056 = vcvt.s32.f32 %v1052
  %v1057 = vcvt.s32.f32 %v1053
  %v1058 = vcvt.s32.f32 %v1054
  %v1059 = vcvt.s32.f32 %v1055
  %vm1062 = vcmask 1041409
  %v1063 = vsel %vm1062, %v1032, %v1017
  %vm1064 = vcmask 130048
  %v1065 = vsel %vm1064, %v1063, 0
  %1067 = vmatpush.msra.mxu0 0.0
  %1068 = vmatpush.msra.mxu0 0.0
  %1069 = vmatpush.msra.mxu0 0.0
  %1070 = vmatpush.msra.mxu0 0.0
  %1071 = vmatpush.msra.mxu0 0.0
  %1072 = vmatpush.msra.mxu0 0.0
  %1073 = vmatpush.msra.mxu0 0.0
  %1074 = vmatpush.msra.mxu0 0.0
  %1075 = vmatpush.msra.mxu0 0.0
  %1076 = vmatpush.msra.mxu0 0.0
  %1077 = vmatpush.msra.mxu0 0.0
  %1078 = vmatpush.msra.mxu0 0.0
  %1079 = vmatpush.msra.mxu0 0.0
  %1080 = vmatpush.msra.mxu0 0.0
  %v1081 = vand.u32 %v1058, 4294901760
  %1082 = vmatpush.msra.mxu0 %v1081
  %v1083 = vand.u32 %v1056, 4294901760
  %1084 = vmatpush.msra.mxu0 %v1083
  %v1085 = vand.u32 %v1065, 4294901760
  %v1086 = vsub.f32 %v1065, %v1085
  %v1087 = vand.u32 %v1086, 4294901760
  %v1088 = vsub.f32 %v1086, %v1087
  %v1089 = vand.u32 %v1088, 4294901760
  %1090 = vmatmul.f32.gmra.mxu0 %v1089
  %v1091 = vpop.f32.mrf.mxu0
  %v1092 = vadd.f32 0.0, %v1091
  %1093 = vdwg.mxu0
  %1094 = vmatpush.msra.mxu0 0.0
  %1095 = vmatpush.msra.mxu0 0.0
  %1096 = vmatpush.msra.mxu0 0.0
  %1097 = vmatpush.msra.mxu0 0.0
  %1098 = vmatpush.msra.mxu0 0.0
  %1099 = vmatpush.msra.mxu0 0.0
  %1100 = vmatpush.msra.mxu0 0.0
  %1101 = vmatpush.msra.mxu0 0.0
  %1102 = vmatpush.msra.mxu0 0.0
  %1103 = vmatpush.msra.mxu0 0.0
  %1104 = vmatpush.msra.mxu0 0.0
  %1105 = vmatpush.msra.mxu0 0.0
  %1106 = vmatpush.msra.mxu0 0.0
  %1107 = vmatpush.msra.mxu0 0.0
  %v1108 = vand.u32 %v1058, 4294901760
  %v1109 = vsub.f32 %v1058, %v1108
  %v1110 = vand.u32 %v1109, 4294901760
  %v1111 = vsub.f32 %v1109, %v1110
  %v1112 = vand.u32 %v1111, 4294901760
  %1113 = vmatpush.msra.mxu0 %v1112
  %v1114 = vand.u32 %v1056, 4294901760
  %v1115 = vsub.f32 %v1056, %v1114
  %v1116 = vand.u32 %v1115, 4294901760
  %v1117 = vsub.f32 %v1115, %v1116
  %v1118 = vand.u32 %v1117, 4294901760
  %1119 = vmatpush.msra.mxu0 %v1118
  %v1120 = vand.u32 %v1065, 4294901760
  %1121 = vmatmul.f32.gmra.mxu0 %v1120
  %v1122 = vpop.f32.mrf.mxu0
  %v1123 = vadd.f32 %v1092, %v1122
  %1124 = vdwg.mxu0
  %1125 = vmatpush.msra.mxu0 0.0
  %1126 = vmatpush.msra.mxu0 0.0
  %1127 = vmatpush.msra.mxu0 0.0
  %1128 = vmatpush.msra.mxu0 0.0
  %1129 = vmatpush.msra.mxu0 0.0
  %1130 = vmatpush.msra.mxu0 0.0
  %1131 = vmatpush.msra.mxu0 0.0
  %1132 = vmatpush.msra.mxu0 0.0
  %1133 = vmatpush.msra.mxu0 0.0
  %1134 = vmatpush.msra.mxu0 0.0
  %1135 = vmatpush.msra.mxu0 0.0
  %1136 = vmatpush.msra.mxu0 0.0
  %1137 = vmatpush.msra.mxu0 0.0
  %1138 = vmatpush.msra.mxu0 0.0
  %v1139 = vand.u32 %v1058, 4294901760
  %v1140 = vsub.f32 %v1058, %v1139
  %1141 = vmatpush.msra.mxu0 %v1140
  %v1142 = vand.u32 %v1056, 4294901760
  %v1143 = vsub.f32 %v1056, %v1142
  %1144 = vmatpush.msra.mxu0 %v1143
  %v1145 = vand.u32 %v1065, 4294901760
  %v1146 = vsub.f32 %v1065, %v1145
  %1147 = vmatmul.f32.gmra.mxu0 %v1146
  %v1148 = vpop.f32.mrf.mxu0
  %v1149 = vadd.f32 %v1123, %v1148
  %1150 = vdwg.mxu0
  %1151 = vmatpush.msra.mxu0 0.0
  %1152 = vmatpush.msra.mxu0 0.0
  %1153 = vmatpush.msra.mxu0 0.0
  %1154 = vmatpush.msra.mxu0 0.0
  %1155 = vmatpush.msra.mxu0 0.0
  %1156 = vmatpush.msra.mxu0 0.0
  %1157 = vmatpush.msra.mxu0 0.0
  %1158 = vmatpush.msra.mxu0 0.0
  %1159 = vmatpush.msra.mxu0 0.0
  %1160 = vmatpush.msra.mxu0 0.0
  %1161 = vmatpush.msra.mxu0 0.0
  %1162 = vmatpush.msra.mxu0 0.0
  %1163 = vmatpush.msra.mxu0 0.0
  %1164 = vmatpush.msra.mxu0 0.0
  %v1165 = vand.u32 %v1058, 4294901760
  %1166 = vmatpush.msra.mxu0 %v1165
  %v1167 = vand.u32 %v1056, 4294901760
  %1168 = vmatpush.msra.mxu0 %v1167
  %v1169 = vand.u32 %v1065, 4294901760
  %v1170 = vsub.f32 %v1065, %v1169
  %v1171 = vand.u32 %v1170, 4294901760
  %1172 = vmatmul.f32.gmra.mxu0 %v1171
  %v1173 = vpop.f32.mrf.mxu0
  %v1174 = vadd.f32 %v1149, %v1173
  %1175 = vdwg.mxu0
  %1176 = vmatpush.msra.mxu0 0.0
  %1177 = vmatpush.msra.mxu0 0.0
  %1178 = vmatpush.msra.mxu0 0.0
  %1179 = vmatpush.msra.mxu0 0.0
  %1180 = vmatpush.msra.mxu0 0.0
  %1181 = vmatpush.msra.mxu0 0.0
  %1182 = vmatpush.msra.mxu0 0.0
  %1183 = vmatpush.msra.mxu0 0.0
  %1184 = vmatpush.msra.mxu0 0.0
  %1185 = vmatpush.msra.mxu0 0.0
  %1186 = vmatpush.msra.mxu0 0.0
  %1187 = vmatpush.msra.mxu0 0.0
  %1188 = vmatpush.msra.mxu0 0.0
  %1189 = vmatpush.msra.mxu0 0.0
  %v1190 = vand.u32 %v1058, 4294901760
  %v1191 = vsub.f32 %v1058, %v1190
  %v1192 = vand.u32 %v1191, 4294901760
  %1193 = vmatpush.msra.mxu0 %v1192
  %v1194 = vand.u32 %v1056, 4294901760
  %v1195 = vsub.f32 %v1056, %v1194
  %v1196 = vand.u32 %v1195, 4294901760
  %1197 = vmatpush.msra.mxu0 %v1196
  %v1198 = vand.u32 %v1065, 4294901760
  %1199 = vmatmul.f32.gmra.mxu0 %v1198
  %v1200 = vpop.f32.mrf.mxu0
  %v1201 = vadd.f32 %v1174, %v1200
  %1202 = vdwg.mxu0
  %1203 = vmatpush.msra.mxu0 0.0
  %1204 = vmatpush.msra.mxu0 0.0
  %1205 = vmatpush.msra.mxu0 0.0
  %1206 = vmatpush.msra.mxu0 0.0
  %1207 = vmatpush.msra.mxu0 0.0
  %1208 = vmatpush.msra.mxu0 0.0
  %1209 = vmatpush.msra.mxu0 0.0
  %1210 = vmatpush.msra.mxu0 0.0
  %1211 = vmatpush.msra.mxu0 0.0
  %1212 = vmatpush.msra.mxu0 0.0
  %1213 = vmatpush.msra.mxu0 0.0
  %1214 = vmatpush.msra.mxu0 0.0
  %1215 = vmatpush.msra.mxu0 0.0
  %1216 = vmatpush.msra.mxu0 0.0
  %v1217 = vand.u32 %v1058, 4294901760
  %1218 = vmatpush.msra.mxu0 %v1217
  %v1219 = vand.u32 %v1056, 4294901760
  %1220 = vmatpush.msra.mxu0 %v1219
  %v1221 = vand.u32 %v1065, 4294901760
  %1222 = vmatmul.f32.gmra.mxu0 %v1221
  %v1223 = vpop.f32.mrf.mxu0
  %v1224 = vadd.f32 %v1201, %v1223
  %1225 = vdwg.mxu0
  %1226 = vmatpush.msra.mxu0 0.0
  %1227 = vmatpush.msra.mxu0 0.0
  %1228 = vmatpush.msra.mxu0 0.0
  %1229 = vmatpush.msra.mxu0 0.0
  %1230 = vmatpush.msra.mxu0 0.0
  %1231 = vmatpush.msra.mxu0 0.0
  %1232 = vmatpush.msra.mxu0 0.0
  %1233 = vmatpush.msra.mxu0 0.0
  %1234 = vmatpush.msra.mxu0 0.0
  %1235 = vmatpush.msra.mxu0 0.0
  %1236 = vmatpush.msra.mxu0 0.0
  %1237 = vmatpush.msra.mxu0 0.0
  %1238 = vmatpush.msra.mxu0 0.0
  %1239 = vmatpush.msra.mxu0 0.0
  %v1240 = vand.u32 %v1059, 4294901760
  %1241 = vmatpush.msra.mxu0 %v1240
  %v1242 = vand.u32 %v1057, 4294901760
  %1243 = vmatpush.msra.mxu0 %v1242
  %v1244 = vand.u32 %v1065, 4294901760
  %v1245 = vsub.f32 %v1065, %v1244
  %v1246 = vand.u32 %v1245, 4294901760
  %v1247 = vsub.f32 %v1245, %v1246
  %v1248 = vand.u32 %v1247, 4294901760
  %1249 = vmatmul.f32.gmra.mxu0 %v1248
  %v1250 = vpop.f32.mrf.mxu0
  %v1251 = vadd.f32 0.0, %v1250
  %1252 = vdwg.mxu0
  %1253 = vmatpush.msra.mxu0 0.0
  %1254 = vmatpush.msra.mxu0 0.0
  %1255 = vmatpush.msra.mxu0 0.0
  %1256 = vmatpush.msra.mxu0 0.0
  %1257 = vmatpush.msra.mxu0 0.0
  %1258 = vmatpush.msra.mxu0 0.0
  %1259 = vmatpush.msra.mxu0 0.0
  %1260 = vmatpush.msra.mxu0 0.0
  %1261 = vmatpush.msra.mxu0 0.0
  %1262 = vmatpush.msra.mxu0 0.0
  %1263 = vmatpush.msra.mxu0 0.0
  %1264 = vmatpush.msra.mxu0 0.0
  %1265 = vmatpush.msra.mxu0 0.0
  %1266 = vmatpush.msra.mxu0 0.0
  %v1267 = vand.u32 %v1059, 4294901760
  %v1268 = vsub.f32 %v1059, %v1267
  %v1269 = vand.u32 %v1268, 4294901760
  %v1270 = vsub.f32 %v1268, %v1269
  %v1271 = vand.u32 %v1270, 4294901760
  %1272 = vmatpush.msra.mxu0 %v1271
  %v1273 = vand.u32 %v1057, 4294901760
  %v1274 = vsub.f32 %v1057, %v1273
  %v1275 = vand.u32 %v1274, 4294901760
  %v1276 = vsub.f32 %v1274, %v1275
  %v1277 = vand.u32 %v1276, 4294901760
  %1278 = vmatpush.msra.mxu0 %v1277
  %v1279 = vand.u32 %v1065, 4294901760
  %1280 = vmatmul.f32.gmra.mxu0 %v1279
  %v1281 = vpop.f32.mrf.mxu0
  %v1282 = vadd.f32 %v1251, %v1281
  %1283 = vdwg.mxu0
  %1284 = vmatpush.msra.mxu0 0.0
  %1285 = vmatpush.msra.mxu0 0.0
  %1286 = vmatpush.msra.mxu0 0.0
  %1287 = vmatpush.msra.mxu0 0.0
  %1288 = vmatpush.msra.mxu0 0.0
  %1289 = vmatpush.msra.mxu0 0.0
  %1290 = vmatpush.msra.mxu0 0.0
  %1291 = vmatpush.msra.mxu0 0.0
  %1292 = vmatpush.msra.mxu0 0.0
  %1293 = vmatpush.msra.mxu0 0.0
  %1294 = vmatpush.msra.mxu0 0.0
  %1295 = vmatpush.msra.mxu0 0.0
  %1296 = vmatpush.msra.mxu0 0.0
  %1297 = vmatpush.msra.mxu0 0.0
  %v1298 = vand.u32 %v1059, 4294901760
  %v1299 = vsub.f32 %v1059, %v1298
  %1300 = vmatpush.msra.mxu0 %v1299
  %v1301 = vand.u32 %v1057, 4294901760
  %v1302 = vsub.f32 %v1057, %v1301
  %1303 = vmatpush.msra.mxu0 %v1302
  %v1304 = vand.u32 %v1065, 4294901760
  %v1305 = vsub.f32 %v1065, %v1304
  %1306 = vmatmul.f32.gmra.mxu0 %v1305
  %v1307 = vpop.f32.mrf.mxu0
  %v1308 = vadd.f32 %v1282, %v1307
  %1309 = vdwg.mxu0
  %1310 = vmatpush.msra.mxu0 0.0
  %1311 = vmatpush.msra.mxu0 0.0
  %1312 = vmatpush.msra.mxu0 0.0
  %1313 = vmatpush.msra.mxu0 0.0
  %1314 = vmatpush.msra.mxu0 0.0
  %1315 = vmatpush.msra.mxu0 0.0
  %1316 = vmatpush.msra.mxu0 0.0
  %1317 = vmatpush.msra.mxu0 0.0
  %1318 = vmatpush.msra.mxu0 0.0
  %1319 = vmatpush.msra.mxu0 0.0
  %1320 = vmatpush.msra.mxu0 0.0
  %1321 = vmatpush.msra.mxu0 0.0
  %1322 = vmatpush.msra.mxu0 0.0
  %1323 = vmatpush.msra.mxu0 0.0
  %v1324 = vand.u32 %v1059, 4294901760
  %1325 = vmatpush.msra.mxu0 %v1324
  %v1326 = vand.u32 %v1057, 4294901760
  %1327 = vmatpush.msra.mxu0 %v1326
  %v1328 = vand.u32 %v1065, 4294901760
  %v1329 = vsub.f32 %v1065, %v1328
  %v1330 = vand.u32 %v1329, 4294901760
  %1331 = vmatmul.f32.gmra.mxu0 %v1330
  %v1332 = vpop.f32.mrf.mxu0
  %v1333 = vadd.f32 %v1308, %v1332
  %1334 = vdwg.mxu0
  %1335 = vmatpush.msra.mxu0 0.0
  %1336 = vmatpush.msra.mxu0 0.0
  %1337 = vmatpush.msra.mxu0 0.0
  %1338 = vmatpush.msra.mxu0 0.0
  %1339 = vmatpush.msra.mxu0 0.0
  %1340 = vmatpush.msra.mxu0 0.0
  %1341 = vmatpush.msra.mxu0 0.0
  %1342 = vmatpush.msra.mxu0 0.0
  %1343 = vmatpush.msra.mxu0 0.0
  %1344 = vmatpush.msra.mxu0 0.0
  %1345 = vmatpush.msra.mxu0 0.0
  %1346 = vmatpush.msra.mxu0 0.0
  %1347 = vmatpush.msra.mxu0 0.0
  %1348 = vmatpush.msra.mxu0 0.0
  %v1349 = vand.u32 %v1059, 4294901760
  %v1350 = vsub.f32 %v1059, %v1349
  %v1351 = vand.u32 %v1350, 4294901760
  %1352 = vmatpush.msra.mxu0 %v1351
  %v1353 = vand.u32 %v1057, 4294901760
  %v1354 = vsub.f32 %v1057, %v1353
  %v1355 = vand.u32 %v1354, 4294901760
  %1356 = vmatpush.msra.mxu0 %v1355
  %v1357 = vand.u32 %v1065, 4294901760
  %1358 = vmatmul.f32.gmra.mxu0 %v1357
  %v1359 = vpop.f32.mrf.mxu0
  %v1360 = vadd.f32 %v1333, %v1359
  %1361 = vdwg.mxu0
  %1362 = vmatpush.msra.mxu0 0.0
  %1363 = vmatpush.msra.mxu0 0.0
  %1364 = vmatpush.msra.mxu0 0.0
  %1365 = vmatpush.msra.mxu0 0.0
  %1366 = vmatpush.msra.mxu0 0.0
  %1367 = vmatpush.msra.mxu0 0.0
  %1368 = vmatpush.msra.mxu0 0.0
  %1369 = vmatpush.msra.mxu0 0.0
  %1370 = vmatpush.msra.mxu0 0.0
  %1371 = vmatpush.msra.mxu0 0.0
  %1372 = vmatpush.msra.mxu0 0.0
  %1373 = vmatpush.msra.mxu0 0.0
  %1374 = vmatpush.msra.mxu0 0.0
  %1375 = vmatpush.msra.mxu0 0.0
  %v1376 = vand.u32 %v1059, 4294901760
  %1377 = vmatpush.msra.mxu0 %v1376
  %v1378 = vand.u32 %v1057, 4294901760
  %1379 = vmatpush.msra.mxu0 %v1378
  %v1380 = vand.u32 %v1065, 4294901760
  %1381 = vmatmul.f32.gmra.mxu0 %v1380
  %v1382 = vpop.f32.mrf.mxu0
  %v1383 = vadd.f32 %v1360, %v1382
  %1384 = vdwg.mxu0
  %v1387 = vrot.slane %v1383, 6
  %vm1388 = vcmask 1041408
  %v1389 = vsel %vm1388, %v1224, %v1387
  %v1391 = vmul.f32 %v18, %v1389
  %1392 = vst [vmem:[%s4] sm:$0xf] %v1391
  // Predicated region
  $region18: #{se_forward.1} parent=0 // pred_check
    _
  $region19: #{se_forward.1} parent=0 // pred_check_branch
    %1394 = sbr.rel (0) target = $region21
  $region20: #{se_forward.1} parent=0 // pred_region
    _
  $region21: #{se_forward.1} parent=0 // pred_fallthru
    _
  // Predicated region
  $region22: #{se_forward.1} parent=0 // pred_check
    _
  $region23: #{se_forward.1} parent=0 // pred_check_branch
    %1396 = sbr.rel (0) target = $region25
  $region24: #{se_forward.1} parent=0 // pred_region
    _
  $region25: #{se_forward.1} parent=0 // pred_fallthru
    _

</llo_original>
